<compile_context>
chip_gen: v5e
topology: v5e:2x2
jax: 0.10.0
libtpu: 0.0.40
codegen_flags: <defaults>
</compile_context>

<pallas_src>
import functools

import jax
import jax.numpy as jnp
from jax.experimental import pallas as pl
from jax.experimental.pallas import tpu as pltpu

_WIDTHS = (1024, 512, 256, 128)   # lane-dense widths (multiples of 128 -> unmasked stores)


@functools.lru_cache(maxsize=None)
def _chip_tile_config():
    """Returns (target tile rows at width=1024, vmem_limit_bytes or None)."""
    try:
        kind = jax.devices()[0].device_kind.lower()
    except Exception:
        kind = ""
    if "v5 lite" in kind or "v5e" in kind:
        # 2 MiB f32 blocks: stays inside v5e's 16 MiB default scoped-VMEM limit.
        return 512, None
    if "v6" in kind or "trillium" in kind:
        # 4 MiB blocks: ~16 MiB live with double-buffered in+out, ample headroom.
        return 1024, None
    if "v7" in kind:
        # 8 MiB blocks amortize per-step overhead against ~3.2 TB/s HBM; the
        # 32 MiB of double-buffered in+out needs the scoped limit raised.
        return 2048, 48 * 1024 * 1024
    # Unknown / other chips: safe middle ground.
    return 1024, None


def _pick_tile_rows(rows, target_rows):
    """Tile height: full-dim block for tiny inputs, else >= ~4 pipelined steps."""
    if rows <= 32:
        return rows                       # single full-dim block (legal for any rows)
    quarter = -(-rows // 4)               # ceil(rows / 4)
    quarter = -(-quarter // 8) * 8        # round up to the sublane multiple
    return max(8, min(target_rows, quarter))


def _quant_kernel(scale_ref, x_ref, o_ref):
    """Elementwise round(x / scale).

    scale_ref: (1,) f32 in SMEM.  x_ref / o_ref: (tile_rows, width) VMEM tiles.
    """
    x = x_ref[...].astype(jnp.float32)
    # torch.round rounds half-to-even; jnp.round matches.  True divide (not a
    # precomputed reciprocal multiply) keeps parity with torch at .5 ties.
    o_ref[...] = jnp.round(x / scale_ref[0]).astype(o_ref.dtype)


@functools.partial(jax.jit, static_argnames=("width", "tile_rows", "pad", "vmem_limit"))
def _quant_impl(x, scale_arr, *, width, tile_rows, pad, vmem_limit):
    orig_shape = x.shape
    flat = x.reshape(-1)                          # contiguous reshape: bitcast, no copy
    if pad:
        # Ragged fallback (count not a multiple of 128): pad < `width` elements.
        # TODO(synk): truly ragged sizes still pay one pad pass + one slice pass.
        flat = jnp.pad(flat, (0, pad))
    rows = flat.shape[0] // width
    x2d = flat.reshape(rows, width)               # bitcast, no copy

    n_elems = rows * width
    itemsize = jnp.dtype(x.dtype).itemsize
    cp_kwargs = dict(dimension_semantics=("parallel",))
    if vmem_limit is not None:
        cp_kwargs["vmem_limit_bytes"] = vmem_limit

    out2d = pl.pallas_call(
        _quant_kernel,
        out_shape=jax.ShapeDtypeStruct((rows, width), x.dtype),
        grid=(pl.cdiv(rows, tile_rows),),         # partial last block is masked by Pallas
        in_specs=[
            pl.BlockSpec(memory_space=pltpu.MemorySpace.SMEM),   # scale (runtime scalar)
            pl.BlockSpec((tile_rows, width), lambda i: (i, 0)),  # x tile (VMEM)
        ],
        out_specs=pl.BlockSpec((tile_rows, width), lambda i: (i, 0)),
        compiler_params=pltpu.CompilerParams(**cp_kwargs),
        cost_estimate=pl.CostEstimate(
            flops=2 * n_elems,
            transcendentals=0,
            bytes_accessed=2 * n_elems * itemsize,
        ),
    )(scale_arr, x2d)

    out = out2d.reshape(-1)
    if pad:
        out = out[: out.shape[0] - pad]
    return out.reshape(orig_shape)


def quant(x, scale):
    """JAX/Pallas equivalent of Quant.forward(x, scale) = round(x / scale)."""
    # TODO(synk): RoundNoGradient's straight-through backward (identity through
    # the round) is not wired up via jax.custom_vjp; forward pass only.
    x = jnp.asarray(x)
    n = x.size
    if n == 0:
        return x
    scale_arr = jnp.asarray(scale, jnp.float32).reshape(1)

    target_rows_1024, vmem_limit = _chip_tile_config()

    width = next((w for w in _WIDTHS if n % w == 0), None)
    if width is None:
        width = _WIDTHS[0]
        pad = (-n) % width
    else:
        pad = 0

    rows = (n + pad) // width
    target_rows = max(8, target_rows_1024 * _WIDTHS[0] // width)  # ~constant block bytes
    tile_rows = _pick_tile_rows(rows, target_rows)

    return _quant_impl(x, scale_arr, width=width, tile_rows=tile_rows,
                       pad=pad, vmem_limit=vmem_limit)


if __name__ == "__main__":
    key = jax.random.PRNGKey(0)
    # Small NCHW input consistent with a conv-style activation tensor (aligned path).
    x = jax.random.normal(key, (2, 4, 16, 16), dtype=jnp.float32) * 4.0
    scale = 0.5

    out = jax.block_until_ready(quant(x, scale))
    ref = jnp.round(x / jnp.asarray(scale, jnp.float32)).astype(x.dtype)
    assert out.shape == x.shape and out.dtype == x.dtype
    assert bool(jnp.all(out == ref))

    # Ragged shape (exercises the pad / partial-slab fallback path).
    x2 = jax.random.normal(jax.random.PRNGKey(1), (3, 5, 7, 11), dtype=jnp.float32) * 3.0
    scale2 = 0.37
    out2 = jax.block_until_ready(quant(x2, scale2))
    ref2 = jnp.round(x2 / jnp.asarray(scale2, jnp.float32))
    assert out2.shape == x2.shape
    assert bool(jnp.all(out2 == ref2))

    # Medium size that is a multiple of 512 but not 1024 (zero-copy width-select path).
    x3 = jax.random.normal(jax.random.PRNGKey(2), (2, 3, 16, 16), dtype=jnp.float32) * 2.0
    out3 = jax.block_until_ready(quant(x3, 0.125))
    ref3 = jnp.round(x3 / jnp.float32(0.125))
    assert bool(jnp.all(out3 == ref3))

    print("KERNEL_OK")
</pallas_src>

<mosaic_0001>
module attributes {stable_mosaic.version = 11 : i64} {
  func.func @_quant_kernel(%arg0: i32, %arg1: memref<1xf32, #tpu.memory_space<smem>>, %arg2: memref<2x1024xf32, #tpu.memory_space<vmem>>, %arg3: memref<2x1024xf32, #tpu.memory_space<vmem>>) attributes {dimension_semantics = [#tpu.dimension_semantics<parallel>], iteration_bounds = array<i64: 1>, scalar_prefetch = 0 : i64, scratch_operands = 0 : i64, tpu.core_type = #tpu.core_type<tc>, window_params = [{transform_indices = @transform_0, window_bounds = array<i64: 1>}, {transform_indices = @transform_1, window_bounds = array<i64: 2, 1024>}, {transform_indices = @transform_2, window_bounds = array<i64: 2, 1024>}]} {
    %c0 = arith.constant 0 : index
    %c0_0 = arith.constant 0 : index
    %0 = vector.load %arg2[%c0, %c0_0] : memref<2x1024xf32, #tpu.memory_space<vmem>>, vector<2x1024xf32>
    %c0_1 = arith.constant 0 : index
    %1 = memref.load %arg1[%c0_1] : memref<1xf32, #tpu.memory_space<smem>>
    %2 = vector.broadcast %1 : f32 to vector<2x1024xf32>
    %3 = arith.divf %0, %2 : vector<2x1024xf32>
    %4 = math.roundeven %3 : vector<2x1024xf32>
    %c0_2 = arith.constant 0 : index
    %c0_3 = arith.constant 0 : index
    %5 = vector.load %arg3[%c0_2, %c0_3] : memref<2x1024xf32, #tpu.memory_space<vmem>>, vector<2x1024xf32>
    tpu.vector_store %arg3[%c0_2, %c0_3], %4 {strides = array<i32>} : memref<2x1024xf32, #tpu.memory_space<vmem>>, vector<2x1024xf32>,
    return
  }
  func.func @transform_0(%arg0: i32) -> i32 {
    %c0_i32 = arith.constant 0 : i32
    %c0_i32_0 = arith.constant 0 : i32
    return %c0_i32 : i32
  }
  func.func @transform_1(%arg0: i32) -> (i32, i32) {
    %c0_i32 = arith.constant 0 : i32
    %c0_i32_0 = arith.constant 0 : i32
    return %arg0, %c0_i32 : i32, i32
  }
  func.func @transform_2(%arg0: i32) -> (i32, i32) {
    %c0_i32 = arith.constant 0 : i32
    %c0_i32_0 = arith.constant 0 : i32
    return %arg0, %c0_i32 : i32, i32
  }
}

</mosaic_0001>

<llo_original>
// kernel: _quant_impl.1
$region0: #{_quant_impl.1}
  #allocation0 [shape = 'u32[]', space=smem, size = 0x4, offset = 0x4, fixed_abs, tag = 'smem constant byte address 0x4 - core index']
  #allocation1 [shape = 'u32[72,128]{1,0:T(1,128)}', space=vmem, size = 0x9000, scoped, tag = 'internal scratch']
  #allocation2 [shape = 'f32[1]{0:T(128)S(6)}', space=smem, size = 0x200, scoped, tag = 'scoped memory for _quant_impl.1']
  %s0 = inlined_call_operand.<no memory space> [shape: f32[1], index: 0, kind: input, shape index: {}]
  %s1 = inlined_call_operand.vmem [shape: f32[2,1024], index: 1, kind: input, shape index: {}]
  %s2 = inlined_call_operand.vmem [shape: f32[2,1024], index: 2, kind: output, shape index: {}]
  %s3 = sld [smem:[#allocation0]]
  $region18: #{_quant_impl.1} parent=0
    _
  %s5 = ssub.s32 1, %s3
  %s6 = scalar_select 0, %s5, %s3
  %7 = sst [smem:[#allocation2]] %s0
  // Predicated region
  $region2: #{_quant_impl.1} parent=0 // pred_check
    _
  $region3: #{_quant_impl.1} parent=0 // pred_check_branch
    %9 = sbr.rel (0) target = $region5
  $region4: #{_quant_impl.1} parent=0 // pred_region
    _
  $region5: #{_quant_impl.1} parent=0 // pred_fallthru
    _
  // Predicated region
  $region6: #{_quant_impl.1} parent=0 // pred_check
    _
  $region7: #{_quant_impl.1} parent=0 // pred_check_branch
    %11 = sbr.rel (0) target = $region9
  $region8: #{_quant_impl.1} parent=0 // pred_region
    _
  $region9: #{_quant_impl.1} parent=0 // pred_fallthru
    _
  %v12 = vld [vmem:[%s1] sm:$0xff]
  %v13 = vld [vmem:[%s1 + $0x8] sm:$0xff]
  %s14 = sld [smem:[#allocation2]]
  %v15 = vstv %s14
  %v16 = vrcp.pop %v15
  %v17 = vmul.f32 %v15, %v16
  %v18 = vsub.f32 1.0, %v17
  %v19 = vmul.f32 %v16, %v18
  %v20 = vadd.f32 %v16, %v19
  %vm21 = vweird.f32 %v15
  %vm22 = vweird.f32 %v16
  %vm23 = vmor %vm21, %vm22
  %v24 = vsel %vm23, %v16, %v20
  %v25 = vand.u32 2147483647, %v15
  %vm26 = vcmp.eq.f32.partialorder %v25, 8.507059e+37
  %v27 = vand.u32 %v15, 2147483648
  %v28 = vor.u32 1.1754944e-38, %v27
  %v29 = vsel %vm26, %v28, %v24
  %v30 = vmul.f32 %v12, %v29
  %v31 = vmul.f32 %v13, %v29
  %v32 = vround.ne.pseudo %v30
  %v33 = vround.ne.pseudo %v31
  %34 = vst [vmem:[%s2] sm:$0xff] %v32
  %35 = vst [vmem:[%s2 + $0x8] sm:$0xff] %v33
  // Predicated region
  $region10: #{_quant_impl.1} parent=0 // pred_check
    _
  $region11: #{_quant_impl.1} parent=0 // pred_check_branch
    %37 = sbr.rel (0) target = $region13
  $region12: #{_quant_impl.1} parent=0 // pred_region
    _
  $region13: #{_quant_impl.1} parent=0 // pred_fallthru
    _
  // Predicated region
  $region14: #{_quant_impl.1} parent=0 // pred_check
    _
  $region15: #{_quant_impl.1} parent=0 // pred_check_branch
    %39 = sbr.rel (0) target = $region17
  $region16: #{_quant_impl.1} parent=0 // pred_region
    _
  $region17: #{_quant_impl.1} parent=0 // pred_fallthru
    _

</llo_original>
